<compile_context>
chip_gen: v5e
topology: v5e:2x2
jax: 0.10.0
libtpu: 0.0.40
codegen_flags: <defaults>
</compile_context>

<pallas_src>
import jax
import jax.numpy as jnp
from jax.experimental import pallas as pl
from jax.experimental.pallas import tpu as pltpu


def _vmem_budget_bytes():
    """(vmem_limit_bytes, double-buffered tile budget), gated on the TPU generation."""
    default_cap = 64 * 1024 * 1024          # v7x per-TC VMEM (most restrictive)
    try:
        info = pltpu.get_tpu_info()
        cap = getattr(info, "vmem_capacity_bytes", None) or default_cap
    except Exception:                        # interpret mode / older jax: stay conservative
        cap = default_cap
    vmem_limit = min(int(cap * 3 // 4), 96 * 1024 * 1024)   # leave compiler-scratch headroom
    tile_budget = vmem_limit // 2
    return vmem_limit, tile_budget


def _choose_block_m(m_pad, cin2, cout2, *, tile_budget, max_live_vregs=48):
    """Largest 128-multiple divisor of m_pad whose double-buffered tiles fit the VMEM
    budget and whose per-step live values stay within a vreg-liveness cap (no spills).
    No minimum step-count is imposed: block_m == m_pad is allowed when it fits."""
    assert m_pad % 128 == 0
    # f32 bytes per mode column of one grid step's tiles: a (2Cin) + w (2Cin*2Cout) + o (2Cout)
    bytes_per_col = 4 * (cin2 + cin2 * cout2 + cout2)
    # rough f32 words live per mode column in the MAC loop: acc + one weight slice + one a row
    live_words_per_col = 2 * cout2 + 2
    k = m_pad // 128
    best = 128
    for d in range(1, k + 1):
        if k % d:
            continue
        block = 128 * d
        if 2 * block * bytes_per_col > tile_budget:          # x2: double-buffered pipeline
            continue
        if live_words_per_col * block > max_live_vregs * 1024:
            continue
        best = max(best, block)
    return best


def _spectral_mul_kernel(a_ref, w_ref, o_ref):
    """out[0, o, m] = sum_c a[0, c, m] * w[c, o, m]   (real block-form complex contraction).

    a_ref: (1, 2*Cin, bm)   one batch element, re/im folded into the channel axis
    w_ref: (2*Cin, 2*Cout, bm)   [[Wr, Wi], [-Wi, Wr]]
    o_ref: (1, 2*Cout, bm)
    Modes (bm, multiple of 128) ride the lanes; the 2*Cin contraction is an unrolled
    VPU FMA loop with per-iteration Ref loads (no whole-block materialization).
    """
    cin2 = a_ref.shape[1]
    cout2 = w_ref.shape[1]
    bm = a_ref.shape[2]

    acc = jnp.zeros((cout2, bm), jnp.float32)
    for c in range(cin2):            # static & small -> fully unrolled
        a_c = a_ref[:, c, :]         # (1, bm)   per-iteration VMEM load
        w_c = w_ref[c]               # (2*Cout, bm)
        acc = acc + a_c * w_c        # sublane-broadcast FMA
    o_ref[0] = acc


def _spectral_mul_pallas(a, w, *, block_m, vmem_limit):
    """a: (B, 2Cin, Mpad) f32, w: (2Cin, 2Cout, Mpad) f32 -> (B, 2Cout, Mpad) f32."""
    bsz, cin2, m_pad = a.shape
    cout2 = w.shape[1]
    assert m_pad % block_m == 0
    grid = (m_pad // block_m, bsz)   # B innermost: weight DMA skipped on revisits

    a_spec = pl.BlockSpec((1, cin2, block_m), lambda m, b: (b, 0, m))
    w_spec = pl.BlockSpec((cin2, cout2, block_m), lambda m, b: (0, 0, m))
    o_spec = pl.BlockSpec((1, cout2, block_m), lambda m, b: (b, 0, m))

    cost = pl.CostEstimate(
        flops=2 * bsz * cin2 * cout2 * m_pad,
        transcendentals=0,
        bytes_accessed=4 * (a.size + w.size + bsz * cout2 * m_pad),
    )

    return pl.pallas_call(
        _spectral_mul_kernel,
        out_shape=jax.ShapeDtypeStruct((bsz, cout2, m_pad), jnp.float32),
        grid_spec=pltpu.PrefetchScalarGridSpec(
            num_scalar_prefetch=0,
            grid=grid,
            in_specs=[a_spec, w_spec],
            out_specs=o_spec,
        ),
        compiler_params=pltpu.CompilerParams(
            dimension_semantics=("parallel", "parallel"),
            vmem_limit_bytes=vmem_limit,
        ),
        cost_estimate=cost,
    )(a, w)


class SpectralConv2dFast:
    """JAX/Pallas port of SpectralConv2d_fast."""

    def __init__(self, in_channels, out_channels, modes1, modes2, key):
        self.in_channels = in_channels
        self.out_channels = out_channels
        self.modes1 = modes1
        self.modes2 = modes2
        scale = 1.0 / (in_channels * out_channels)
        k1, k2, k3, k4 = jax.random.split(key, 4)
        shape = (in_channels, out_channels, modes1, modes2)
        # torch.rand on cfloat -> uniform [0,1) real and imag parts, scaled.
        self.weights1 = (
            scale * jax.random.uniform(k1, shape, jnp.float32)
            + 1j * scale * jax.random.uniform(k2, shape, jnp.float32)
        ).astype(jnp.complex64)
        self.weights2 = (
            scale * jax.random.uniform(k3, shape, jnp.float32)
            + 1j * scale * jax.random.uniform(k4, shape, jnp.float32)
        ).astype(jnp.complex64)

        # ---- Precompute weights ONCE in the kernel layout (static across calls) ----
        # Complex (Cin, Cout, m1, m2) x2 bands -> real block form (2Cin, 2Cout, Mpad),
        # modes on the lane axis.  Row blocks = [a_re; a_im], col blocks = [out_re, out_im]:
        #   W~ = [[ Wr,  Wi ],
        #         [-Wi,  Wr ]]
        m_total = 2 * modes1 * modes2
        m_pad = ((m_total + 127) // 128) * 128
        self._m_total = m_total
        self._m_pad = m_pad

        wc = jnp.stack([self.weights1, self.weights2], axis=2)            # (Cin,Cout,2,m1,m2)
        wc = wc.reshape(in_channels, out_channels, m_total)               # (Cin,Cout,M)
        wr = jnp.real(wc).astype(jnp.float32)
        wi = jnp.imag(wc).astype(jnp.float32)
        w_block = jnp.concatenate(
            [jnp.concatenate([wr, wi], axis=1),                           # a_re rows
             jnp.concatenate([-wi, wr], axis=1)],                         # a_im rows
            axis=0)                                                       # (2Cin,2Cout,M)
        self._w_packed = jnp.pad(
            w_block, ((0, 0), (0, 0), (0, m_pad - m_total)))              # (2Cin,2Cout,Mpad)

        # Generation-gated VMEM budget and block size (depend only on static shapes).
        self._vmem_limit, tile_budget = _vmem_budget_bytes()
        self._block_m = _choose_block_m(
            m_pad, 2 * in_channels, 2 * out_channels, tile_budget=tile_budget)

    def __call__(self, x):
        # x: (B, Cin, H, W) float32 (NCHW, matching the PyTorch module)
        bsz, cin, h, w = x.shape
        m1, m2 = self.modes1, self.modes2
        wf = w // 2 + 1
        cout = self.out_channels
        m_total, m_pad = self._m_total, self._m_pad

        # TODO(synk): rfft2/irfft2 stay as jnp.fft ops (no Pallas TPU FFT primitive).
        x_ft = jnp.fft.rfft2(x, axes=(-2, -1))                            # (B,Cin,H,Wf) c64

        # Retained mode bands -> (B, 2*Cin, Mpad) with re/im folded into the channel axis.
        a_c = jnp.concatenate(
            [x_ft[:, :, :m1, :m2], x_ft[:, :, h - m1:, :m2]], axis=2)     # (B,Cin,2*m1,m2)
        a_c = a_c.reshape(bsz, cin, m_total)
        a = jnp.concatenate(
            [jnp.real(a_c), jnp.imag(a_c)], axis=1).astype(jnp.float32)   # (B,2Cin,M)
        if m_pad != m_total:
            a = jnp.pad(a, ((0, 0), (0, 0), (0, m_pad - m_total)))

        o = _spectral_mul_pallas(a, self._w_packed,
                                 block_m=self._block_m,
                                 vmem_limit=self._vmem_limit)             # (B,2Cout,Mpad)

        o = o[..., :m_total]
        o_c = (o[:, :cout] + 1j * o[:, cout:]).astype(jnp.complex64)      # (B,Cout,M)
        o_c = o_c.reshape(bsz, cout, 2, m1, m2)
        top, bot = o_c[:, :, 0], o_c[:, :, 1]

        if h >= 2 * m1:
            # Disjoint bands: assemble out_ft with concat + pad (no scatter updates).
            mid = jnp.zeros((bsz, cout, h - 2 * m1, m2), jnp.complex64)
            cols = jnp.concatenate([top, mid, bot], axis=2)               # (B,Cout,H,m2)
            out_ft = jnp.pad(cols, ((0, 0), (0, 0), (0, 0), (0, wf - m2)))
        else:
            # Degenerate overlapping-band case: keep PyTorch overwrite semantics.
            out_ft = jnp.zeros((bsz, cout, h, wf), dtype=jnp.complex64)
            out_ft = out_ft.at[:, :, :m1, :m2].set(top)
            out_ft = out_ft.at[:, :, h - m1:, :m2].set(bot)

        return jnp.fft.irfft2(out_ft, s=(h, w), axes=(-2, -1)).astype(jnp.float32)


def _reference_forward(module, x):
    """Pure-JAX reference matching the PyTorch forward (sanity check)."""
    B, Cin, H, W = x.shape
    m1, m2 = module.modes1, module.modes2
    x_ft = jnp.fft.rfft2(x, axes=(-2, -1))
    out_ft = jnp.zeros((B, module.out_channels, H, W // 2 + 1), dtype=jnp.complex64)
    out_ft = out_ft.at[:, :, :m1, :m2].set(
        jnp.einsum("bixy,ioxy->boxy", x_ft[:, :, :m1, :m2], module.weights1))
    out_ft = out_ft.at[:, :, H - m1:, :m2].set(
        jnp.einsum("bixy,ioxy->boxy", x_ft[:, :, H - m1:, :m2], module.weights2))
    return jnp.fft.irfft2(out_ft, s=(H, W), axes=(-2, -1)).astype(jnp.float32)


if __name__ == "__main__":
    key = jax.random.PRNGKey(0)
    k_param, k_x = jax.random.split(key)

    B, Cin, Cout, H, W = 2, 4, 4, 16, 16
    modes1, modes2 = 4, 4

    module = SpectralConv2dFast(Cin, Cout, modes1, modes2, k_param)
    x = jax.random.normal(k_x, (B, Cin, H, W), dtype=jnp.float32)

    out = jax.block_until_ready(jax.jit(module.__call__)(x))
    ref = jax.block_until_ready(_reference_forward(module, x))

    assert out.shape == (B, Cout, H, W)
    assert jnp.allclose(out, ref, atol=1e-5, rtol=1e-5), float(jnp.max(jnp.abs(out - ref)))

    print("KERNEL_OK")
</pallas_src>

<mosaic_0001>
module attributes {stable_mosaic.version = 11 : i64} {
  func.func @_spectral_mul_kernel(%arg0: i32, %arg1: i32, %arg2: memref<1x8x128xf32, #tpu.memory_space<vmem>>, %arg3: memref<8x8x128xf32, #tpu.memory_space<vmem>>, %arg4: memref<1x8x128xf32, #tpu.memory_space<vmem>>) attributes {dimension_semantics = [#tpu.dimension_semantics<parallel>, #tpu.dimension_semantics<parallel>], iteration_bounds = array<i64: 1, 2>, scalar_prefetch = 0 : i64, scratch_operands = 0 : i64, tpu.core_type = #tpu.core_type<tc>, window_params = [{transform_indices = @transform_0, window_bounds = array<i64: 1, 8, 128>}, {transform_indices = @transform_1, window_bounds = array<i64: 8, 8, 128>}, {transform_indices = @transform_2, window_bounds = array<i64: 1, 8, 128>}]} {
    %cst = arith.constant 0.000000e+00 : f32
    %0 = vector.broadcast %cst : f32 to vector<8x128xf32>
    %c0 = arith.constant 0 : index
    %c0_0 = arith.constant 0 : index
    %c0_1 = arith.constant 0 : index
    %1 = vector.load %arg2[%c0, %c0_0, %c0_1] : memref<1x8x128xf32, #tpu.memory_space<vmem>>, vector<1x1x128xf32>
    %2 = vector.shape_cast %1 : vector<1x1x128xf32> to vector<1x128xf32>
    %c0_2 = arith.constant 0 : index
    %c0_3 = arith.constant 0 : index
    %c0_4 = arith.constant 0 : index
    %3 = vector.load %arg3[%c0_2, %c0_3, %c0_4] : memref<8x8x128xf32, #tpu.memory_space<vmem>>, vector<1x8x128xf32>
    %4 = vector.shape_cast %3 : vector<1x8x128xf32> to vector<8x128xf32>
    %5 = vector.broadcast %2 : vector<1x128xf32> to vector<8x128xf32>
    %6 = arith.mulf %5, %4 : vector<8x128xf32>
    %7 = arith.addf %0, %6 : vector<8x128xf32>
    %c0_5 = arith.constant 0 : index
    %c1 = arith.constant 1 : index
    %c0_6 = arith.constant 0 : index
    %8 = vector.load %arg2[%c0_5, %c1, %c0_6] : memref<1x8x128xf32, #tpu.memory_space<vmem>>, vector<1x1x128xf32>
    %9 = vector.shape_cast %8 : vector<1x1x128xf32> to vector<1x128xf32>
    %c1_7 = arith.constant 1 : index
    %c0_8 = arith.constant 0 : index
    %c0_9 = arith.constant 0 : index
    %10 = vector.load %arg3[%c1_7, %c0_8, %c0_9] : memref<8x8x128xf32, #tpu.memory_space<vmem>>, vector<1x8x128xf32>
    %11 = vector.shape_cast %10 : vector<1x8x128xf32> to vector<8x128xf32>
    %12 = vector.broadcast %9 : vector<1x128xf32> to vector<8x128xf32>
    %13 = arith.mulf %12, %11 : vector<8x128xf32>
    %14 = arith.addf %7, %13 : vector<8x128xf32>
    %c0_10 = arith.constant 0 : index
    %c2 = arith.constant 2 : index
    %c0_11 = arith.constant 0 : index
    %15 = vector.load %arg2[%c0_10, %c2, %c0_11] : memref<1x8x128xf32, #tpu.memory_space<vmem>>, vector<1x1x128xf32>
    %16 = vector.shape_cast %15 : vector<1x1x128xf32> to vector<1x128xf32>
    %c2_12 = arith.constant 2 : index
    %c0_13 = arith.constant 0 : index
    %c0_14 = arith.constant 0 : index
    %17 = vector.load %arg3[%c2_12, %c0_13, %c0_14] : memref<8x8x128xf32, #tpu.memory_space<vmem>>, vector<1x8x128xf32>
    %18 = vector.shape_cast %17 : vector<1x8x128xf32> to vector<8x128xf32>
    %19 = vector.broadcast %16 : vector<1x128xf32> to vector<8x128xf32>
    %20 = arith.mulf %19, %18 : vector<8x128xf32>
    %21 = arith.addf %14, %20 : vector<8x128xf32>
    %c0_15 = arith.constant 0 : index
    %c3 = arith.constant 3 : index
    %c0_16 = arith.constant 0 : index
    %22 = vector.load %arg2[%c0_15, %c3, %c0_16] : memref<1x8x128xf32, #tpu.memory_space<vmem>>, vector<1x1x128xf32>
    %23 = vector.shape_cast %22 : vector<1x1x128xf32> to vector<1x128xf32>
    %c3_17 = arith.constant 3 : index
    %c0_18 = arith.constant 0 : index
    %c0_19 = arith.constant 0 : index
    %24 = vector.load %arg3[%c3_17, %c0_18, %c0_19] : memref<8x8x128xf32, #tpu.memory_space<vmem>>, vector<1x8x128xf32>
    %25 = vector.shape_cast %24 : vector<1x8x128xf32> to vector<8x128xf32>
    %26 = vector.broadcast %23 : vector<1x128xf32> to vector<8x128xf32>
    %27 = arith.mulf %26, %25 : vector<8x128xf32>
    %28 = arith.addf %21, %27 : vector<8x128xf32>
    %c0_20 = arith.constant 0 : index
    %c4 = arith.constant 4 : index
    %c0_21 = arith.constant 0 : index
    %29 = vector.load %arg2[%c0_20, %c4, %c0_21] : memref<1x8x128xf32, #tpu.memory_space<vmem>>, vector<1x1x128xf32>
    %30 = vector.shape_cast %29 : vector<1x1x128xf32> to vector<1x128xf32>
    %c4_22 = arith.constant 4 : index
    %c0_23 = arith.constant 0 : index
    %c0_24 = arith.constant 0 : index
    %31 = vector.load %arg3[%c4_22, %c0_23, %c0_24] : memref<8x8x128xf32, #tpu.memory_space<vmem>>, vector<1x8x128xf32>
    %32 = vector.shape_cast %31 : vector<1x8x128xf32> to vector<8x128xf32>
    %33 = vector.broadcast %30 : vector<1x128xf32> to vector<8x128xf32>
    %34 = arith.mulf %33, %32 : vector<8x128xf32>
    %35 = arith.addf %28, %34 : vector<8x128xf32>
    %c0_25 = arith.constant 0 : index
    %c5 = arith.constant 5 : index
    %c0_26 = arith.constant 0 : index
    %36 = vector.load %arg2[%c0_25, %c5, %c0_26] : memref<1x8x128xf32, #tpu.memory_space<vmem>>, vector<1x1x128xf32>
    %37 = vector.shape_cast %36 : vector<1x1x128xf32> to vector<1x128xf32>
    %c5_27 = arith.constant 5 : index
    %c0_28 = arith.constant 0 : index
    %c0_29 = arith.constant 0 : index
    %38 = vector.load %arg3[%c5_27, %c0_28, %c0_29] : memref<8x8x128xf32, #tpu.memory_space<vmem>>, vector<1x8x128xf32>
    %39 = vector.shape_cast %38 : vector<1x8x128xf32> to vector<8x128xf32>
    %40 = vector.broadcast %37 : vector<1x128xf32> to vector<8x128xf32>
    %41 = arith.mulf %40, %39 : vector<8x128xf32>
    %42 = arith.addf %35, %41 : vector<8x128xf32>
    %c0_30 = arith.constant 0 : index
    %c6 = arith.constant 6 : index
    %c0_31 = arith.constant 0 : index
    %43 = vector.load %arg2[%c0_30, %c6, %c0_31] : memref<1x8x128xf32, #tpu.memory_space<vmem>>, vector<1x1x128xf32>
    %44 = vector.shape_cast %43 : vector<1x1x128xf32> to vector<1x128xf32>
    %c6_32 = arith.constant 6 : index
    %c0_33 = arith.constant 0 : index
    %c0_34 = arith.constant 0 : index
    %45 = vector.load %arg3[%c6_32, %c0_33, %c0_34] : memref<8x8x128xf32, #tpu.memory_space<vmem>>, vector<1x8x128xf32>
    %46 = vector.shape_cast %45 : vector<1x8x128xf32> to vector<8x128xf32>
    %47 = vector.broadcast %44 : vector<1x128xf32> to vector<8x128xf32>
    %48 = arith.mulf %47, %46 : vector<8x128xf32>
    %49 = arith.addf %42, %48 : vector<8x128xf32>
    %c0_35 = arith.constant 0 : index
    %c7 = arith.constant 7 : index
    %c0_36 = arith.constant 0 : index
    %50 = vector.load %arg2[%c0_35, %c7, %c0_36] : memref<1x8x128xf32, #tpu.memory_space<vmem>>, vector<1x1x128xf32>
    %51 = vector.shape_cast %50 : vector<1x1x128xf32> to vector<1x128xf32>
    %c7_37 = arith.constant 7 : index
    %c0_38 = arith.constant 0 : index
    %c0_39 = arith.constant 0 : index
    %52 = vector.load %arg3[%c7_37, %c0_38, %c0_39] : memref<8x8x128xf32, #tpu.memory_space<vmem>>, vector<1x8x128xf32>
    %53 = vector.shape_cast %52 : vector<1x8x128xf32> to vector<8x128xf32>
    %54 = vector.broadcast %51 : vector<1x128xf32> to vector<8x128xf32>
    %55 = arith.mulf %54, %53 : vector<8x128xf32>
    %56 = arith.addf %49, %55 : vector<8x128xf32>
    %c0_40 = arith.constant 0 : index
    %c0_41 = arith.constant 0 : index
    %c0_42 = arith.constant 0 : index
    %57 = vector.load %arg4[%c0_40, %c0_41, %c0_42] : memref<1x8x128xf32, #tpu.memory_space<vmem>>, vector<1x8x128xf32>
    %58 = vector.shape_cast %57 : vector<1x8x128xf32> to vector<8x128xf32>
    %59 = vector.shape_cast %56 : vector<8x128xf32> to vector<1x8x128xf32>
    tpu.vector_store %arg4[%c0_40, %c0_41, %c0_42], %59 {strides = array<i32>} : memref<1x8x128xf32, #tpu.memory_space<vmem>>, vector<1x8x128xf32>,
    return
  }
  func.func @transform_0(%arg0: i32, %arg1: i32) -> (i32, i32, i32) {
    %c0_i32 = arith.constant 0 : i32
    %c0_i32_0 = arith.constant 0 : i32
    return %arg1, %c0_i32, %arg0 : i32, i32, i32
  }
  func.func @transform_1(%arg0: i32, %arg1: i32) -> (i32, i32, i32) {
    %c0_i32 = arith.constant 0 : i32
    %c0_i32_0 = arith.constant 0 : i32
    %c0_i32_1 = arith.constant 0 : i32
    return %c0_i32, %c0_i32_0, %arg0 : i32, i32, i32
  }
  func.func @transform_2(%arg0: i32, %arg1: i32) -> (i32, i32, i32) {
    %c0_i32 = arith.constant 0 : i32
    %c0_i32_0 = arith.constant 0 : i32
    return %arg1, %c0_i32, %arg0 : i32, i32, i32
  }
}

</mosaic_0001>

<llo_original>
// kernel: reverse.0
$region0: #{reverse.0}
  %s0 = inlined_call_operand.vmem [shape: f32[2,4,16,7], index: 0, kind: input, shape index: {}]
  %s1 = inlined_call_operand.vmem [shape: f32[2,4,16,7], index: 1, kind: output, shape index: {}]
  $region1: #{reverse.0} parent=0
    #allocation0 [shape = 'u8[65536]{0}', space=vmem, size = 0x10000, scoped, tag = 'operand span for operand 0']
    #allocation1 [shape = 'u8[32768]{0}', space=vmem, size = 0x8000, scoped, tag = 'operand span for operand 1']
    %s2 = scalar_lea.vmem [#allocation0], 8
    // Predicated region
    $region2: #{reverse.0} parent=1 // pred_check
      _
    $region3: #{reverse.0} parent=1 // pred_check_branch
      %4 = sbr.rel (0) target = $region5
    $region4: #{reverse.0} parent=1 // pred_region
      // Predicated region
      $region6: #{reverse.0} parent=4 // pred_check
        _
      $region7: #{reverse.0} parent=4 // pred_check_branch
        %6 = sbr.rel (0) target = $region9
      $region8: #{reverse.0} parent=4 // pred_region
        // Predicated region
        $region21: #{reverse.0} parent=8 // pred_check
          _
        $region22: #{reverse.0} parent=8 // pred_check_branch
          %36 = sbr.rel (0) target = $region24
        $region23: #{reverse.0} parent=8 // pred_region
          loop: start=0, step=1, limit=1
          $region25: #{reverse.0} parent=23 // loop_pre_header
            _
          $region26: #{reverse.0} parent=23 // loop_header
            %s38 = sphi 0, %s42
            %p39 = scmp.ge.s32.totalorder %s38, 1
            %s43 = sphi %s0, %s0
            %s44 = sphi %s2, %s2
          $region27: #{reverse.0} parent=23 // loop_header_branch
            %41 = sbr.rel (%p39) target = $region31
          $region28: #{reverse.0} parent=23 // loop_body
            %v45 = vld [vmem:[%s43] sm:$0xff]
            %46 = vst [vmem:[%s44] sm:$0xff] %v45
            %v47 = vld [vmem:[%s43 + $0x8] sm:$0xff]
            %48 = vst [vmem:[%s44 + $0x10] sm:$0xff] %v47
            %v49 = vld [vmem:[%s43 + $0x10] sm:$0xff]
            %50 = vst [vmem:[%s44 + $0x20] sm:$0xff] %v49
            %v51 = vld [vmem:[%s43 + $0x18] sm:$0xff]
            %52 = vst [vmem:[%s44 + $0x30] sm:$0xff] %v51
            %v53 = vld [vmem:[%s43 + $0x20] sm:$0xff]
            %54 = vst [vmem:[%s44 + $0x40] sm:$0xff] %v53
            %v55 = vld [vmem:[%s43 + $0x28] sm:$0xff]
            %56 = vst [vmem:[%s44 + $0x50] sm:$0xff] %v55
            %v57 = vld [vmem:[%s43 + $0x30] sm:$0xff]
            %58 = vst [vmem:[%s44 + $0x60] sm:$0xff] %v57
            %v59 = vld [vmem:[%s43 + $0x38] sm:$0xff]
            %60 = vst [vmem:[%s44 + $0x70] sm:$0xff] %v59
          $region29: #{reverse.0} parent=23 // loop_footer
            %s42 = sadd.s32 1, %s38
          $region30: #{reverse.0} parent=23 // loop_footer_branch
            %37 = sbr.rel target = $region26
          $region31: #{reverse.0} parent=23 // loop_exit
            _
        $region24: #{reverse.0} parent=8 // pred_fallthru
          _
        // Predicated region
        $region32: #{reverse.0} parent=8 // pred_check
          _
        $region33: #{reverse.0} parent=8 // pred_check_branch
          %62 = sbr.rel target = $region35
        $region34: #{reverse.0} parent=8 // pred_region
          _
        $region35: #{reverse.0} parent=8 // pred_fallthru
          _
      $region9: #{reverse.0} parent=4 // pred_fallthru
        _
      // Predicated region
      $region10: #{reverse.0} parent=4 // pred_check
        _
      $region11: #{reverse.0} parent=4 // pred_check_branch
        %8 = sbr.rel target = $region13
      $region12: #{reverse.0} parent=4 // pred_region
        %s10 = ssub.s32 256, 1
        loop: start=0, step=1, limit=1
        $region14: #{reverse.0} parent=12 // loop_pre_header
          _
        $region15: #{reverse.0} parent=12 // loop_header
          %s12 = sphi 0, %s16
          %p13 = scmp.ge.s32.totalorder %s12, 1
          %s17 = sphi %s0, %s0
          %s18 = sphi %s2, %s2
        $region16: #{reverse.0} parent=12 // loop_header_branch
          %15 = sbr.rel (%p13) target = $region20
        $region17: #{reverse.0} parent=12 // loop_body
          %v19 = vld [vmem:[%s17] sm:%s10]
          %20 = vst [vmem:[%s18] sm:%s10] %v19
          %v21 = vld [vmem:[%s17 + $0x8] sm:%s10]
          %22 = vst [vmem:[%s18 + $0x10] sm:%s10] %v21
          %v23 = vld [vmem:[%s17 + $0x10] sm:%s10]
          %24 = vst [vmem:[%s18 + $0x20] sm:%s10] %v23
          %v25 = vld [vmem:[%s17 + $0x18] sm:%s10]
          %26 = vst [vmem:[%s18 + $0x30] sm:%s10] %v25
          %v27 = vld [vmem:[%s17 + $0x20] sm:%s10]
          %28 = vst [vmem:[%s18 + $0x40] sm:%s10] %v27
          %v29 = vld [vmem:[%s17 + $0x28] sm:%s10]
          %30 = vst [vmem:[%s18 + $0x50] sm:%s10] %v29
          %v31 = vld [vmem:[%s17 + $0x30] sm:%s10]
          %32 = vst [vmem:[%s18 + $0x60] sm:%s10] %v31
          %v33 = vld [vmem:[%s17 + $0x38] sm:%s10]
          %34 = vst [vmem:[%s18 + $0x70] sm:%s10] %v33
        $region18: #{reverse.0} parent=12 // loop_footer
          %s16 = sadd.s32 1, %s12
        $region19: #{reverse.0} parent=12 // loop_footer_branch
          %11 = sbr.rel target = $region15
        $region20: #{reverse.0} parent=12 // loop_exit
          _
      $region13: #{reverse.0} parent=4 // pred_fallthru
        _
    $region5: #{reverse.0} parent=1 // pred_fallthru
      _
    %63 = vnop
    %s64 = scalar_lea.vmem [#allocation0], 7
    %v65 = vld [vmem:[%s64] ss:$-1 sm:$0xff]
    %v66 = vrot.slane %v65, 1
    %67 = vst [vmem:[#allocation1] sm:$0xff] %v66
    %s68 = scalar_lea.vmem [#allocation0], 8
    %s69 = scalar_lea.vmem %s68, 7 [#allocation0]
    %v70 = vld [vmem:[%s69] ss:$-1 sm:$0xff]
    %v71 = vrot.slane %v70, 1
    %v72 = vlaneseq
    %v73 = vshrl.u32 %v72, 7
    %vm74 = vcmp.lt.s32.totalorder %v73, 7
    %75 = vst.msk [vmem:[#allocation1] sm:$0xff] %vm74, %v71
    %s76 = scalar_lea.vmem [#allocation1], 8
    %s77 = scalar_lea.vmem [#allocation0], 16
    %s78 = scalar_lea.vmem %s77, 7 [#allocation0]
    %v79 = vld [vmem:[%s78] ss:$-1 sm:$0xff]
    %v80 = vrot.slane %v79, 1
    %81 = vst [vmem:[%s76] sm:$0xff] %v80
    %s82 = scalar_lea.vmem %s77, 8 [#allocation0]
    %s83 = scalar_lea.vmem %s82, 7 [#allocation0]
    %v84 = vld [vmem:[%s83] ss:$-1 sm:$0xff]
    %v85 = vrot.slane %v84, 1
    %v86 = vlaneseq
    %v87 = vshrl.u32 %v86, 7
    %vm88 = vcmp.lt.s32.totalorder %v87, 7
    %89 = vst.msk [vmem:[%s76] sm:$0xff] %vm88, %v85
    %s90 = scalar_lea.vmem [#allocation1], 16
    %s91 = scalar_lea.vmem [#allocation0], 32
    %s92 = scalar_lea.vmem %s91, 7 [#allocation0]
    %v93 = vld [vmem:[%s92] ss:$-1 sm:$0xff]
    %v94 = vrot.slane %v93, 1
    %95 = vst [vmem:[%s90] sm:$0xff] %v94
    %s96 = scalar_lea.vmem %s91, 8 [#allocation0]
    %s97 = scalar_lea.vmem %s96, 7 [#allocation0]
    %v98 = vld [vmem:[%s97] ss:$-1 sm:$0xff]
    %v99 = vrot.slane %v98, 1
    %v100 = vlaneseq
    %v101 = vshrl.u32 %v100, 7
    %vm102 = vcmp.lt.s32.totalorder %v101, 7
    %103 = vst.msk [vmem:[%s90] sm:$0xff] %vm102, %v99
    %s104 = scalar_lea.vmem [#allocation1], 24
    %s105 = scalar_lea.vmem [#allocation0], 48
    %s106 = scalar_lea.vmem %s105, 7 [#allocation0]
    %v107 = vld [vmem:[%s106] ss:$-1 sm:$0xff]
    %v108 = vrot.slane %v107, 1
    %109 = vst [vmem:[%s104] sm:$0xff] %v108
    %s110 = scalar_lea.vmem %s105, 8 [#allocation0]
    %s111 = scalar_lea.vmem %s110, 7 [#allocation0]
    %v112 = vld [vmem:[%s111] ss:$-1 sm:$0xff]
    %v113 = vrot.slane %v112, 1
    %v114 = vlaneseq
    %v115 = vshrl.u32 %v114, 7
    %vm116 = vcmp.lt.s32.totalorder %v115, 7
    %117 = vst.msk [vmem:[%s104] sm:$0xff] %vm116, %v113
    %s118 = scalar_lea.vmem [#allocation1], 32
    %s119 = scalar_lea.vmem [#allocation0], 64
    %s120 = scalar_lea.vmem %s119, 7 [#allocation0]
    %v121 = vld [vmem:[%s120] ss:$-1 sm:$0xff]
    %v122 = vrot.slane %v121, 1
    %123 = vst [vmem:[%s118] sm:$0xff] %v122
    %s124 = scalar_lea.vmem %s119, 8 [#allocation0]
    %s125 = scalar_lea.vmem %s124, 7 [#allocation0]
    %v126 = vld [vmem:[%s125] ss:$-1 sm:$0xff]
    %v127 = vrot.slane %v126, 1
    %v128 = vlaneseq
    %v129 = vshrl.u32 %v128, 7
    %vm130 = vcmp.lt.s32.totalorder %v129, 7
    %131 = vst.msk [vmem:[%s118] sm:$0xff] %vm130, %v127
    %s132 = scalar_lea.vmem [#allocation1], 40
    %s133 = scalar_lea.vmem [#allocation0], 80
    %s134 = scalar_lea.vmem %s133, 7 [#allocation0]
    %v135 = vld [vmem:[%s134] ss:$-1 sm:$0xff]
    %v136 = vrot.slane %v135, 1
    %137 = vst [vmem:[%s132] sm:$0xff] %v136
    %s138 = scalar_lea.vmem %s133, 8 [#allocation0]
    %s139 = scalar_lea.vmem %s138, 7 [#allocation0]
    %v140 = vld [vmem:[%s139] ss:$-1 sm:$0xff]
    %v141 = vrot.slane %v140, 1
    %v142 = vlaneseq
    %v143 = vshrl.u32 %v142, 7
    %vm144 = vcmp.lt.s32.totalorder %v143, 7
    %145 = vst.msk [vmem:[%s132] sm:$0xff] %vm144, %v141
    %s146 = scalar_lea.vmem [#allocation1], 48
    %s147 = scalar_lea.vmem [#allocation0], 96
    %s148 = scalar_lea.vmem %s147, 7 [#allocation0]
    %v149 = vld [vmem:[%s148] ss:$-1 sm:$0xff]
    %v150 = vrot.slane %v149, 1
    %151 = vst [vmem:[%s146] sm:$0xff] %v150
    %s152 = scalar_lea.vmem %s147, 8 [#allocation0]
    %s153 = scalar_lea.vmem %s152, 7 [#allocation0]
    %v154 = vld [vmem:[%s153] ss:$-1 sm:$0xff]
    %v155 = vrot.slane %v154, 1
    %v156 = vlaneseq
    %v157 = vshrl.u32 %v156, 7
    %vm158 = vcmp.lt.s32.totalorder %v157, 7
    %159 = vst.msk [vmem:[%s146] sm:$0xff] %vm158, %v155
    %s160 = scalar_lea.vmem [#allocation1], 56
    %s161 = scalar_lea.vmem [#allocation0], 112
    %s162 = scalar_lea.vmem %s161, 7 [#allocation0]
    %v163 = vld [vmem:[%s162] ss:$-1 sm:$0xff]
    %v164 = vrot.slane %v163, 1
    %165 = vst [vmem:[%s160] sm:$0xff] %v164
    %s166 = scalar_lea.vmem %s161, 8 [#allocation0]
    %s167 = scalar_lea.vmem %s166, 7 [#allocation0]
    %v168 = vld [vmem:[%s167] ss:$-1 sm:$0xff]
    %v169 = vrot.slane %v168, 1
    %v170 = vlaneseq
    %v171 = vshrl.u32 %v170, 7
    %vm172 = vcmp.lt.s32.totalorder %v171, 7
    %173 = vst.msk [vmem:[%s160] sm:$0xff] %vm172, %v169
    // Predicated region
    $region36: #{reverse.0} parent=1 // pred_check
      _
    $region37: #{reverse.0} parent=1 // pred_check_branch
      %175 = sbr.rel (0) target = $region39
    $region38: #{reverse.0} parent=1 // pred_region
      // Predicated region
      $region40: #{reverse.0} parent=38 // pred_check
        _
      $region41: #{reverse.0} parent=38 // pred_check_branch
        %177 = sbr.rel (0) target = $region43
      $region42: #{reverse.0} parent=38 // pred_region
        // Predicated region
        $region55: #{reverse.0} parent=42 // pred_check
          _
        $region56: #{reverse.0} parent=42 // pred_check_branch
          %207 = sbr.rel (0) target = $region58
        $region57: #{reverse.0} parent=42 // pred_region
          loop: start=0, step=1, limit=1
          $region59: #{reverse.0} parent=57 // loop_pre_header
            _
          $region60: #{reverse.0} parent=57 // loop_header
            %s209 = sphi 0, %s213
            %p210 = scmp.ge.s32.totalorder %s209, 1
            %s214 = sphi [#allocation1], [#allocation1]
            %s215 = sphi %s1, %s1
          $region61: #{reverse.0} parent=57 // loop_header_branch
            %212 = sbr.rel (%p210) target = $region65
          $region62: #{reverse.0} parent=57 // loop_body
            %v216 = vld [vmem:[%s214] sm:$0xff]
            %217 = vst [vmem:[%s215] sm:$0xff] %v216
            %v218 = vld [vmem:[%s214 + $0x8] sm:$0xff]
            %219 = vst [vmem:[%s215 + $0x8] sm:$0xff] %v218
            %v220 = vld [vmem:[%s214 + $0x10] sm:$0xff]
            %221 = vst [vmem:[%s215 + $0x10] sm:$0xff] %v220
            %v222 = vld [vmem:[%s214 + $0x18] sm:$0xff]
            %223 = vst [vmem:[%s215 + $0x18] sm:$0xff] %v222
            %v224 = vld [vmem:[%s214 + $0x20] sm:$0xff]
            %225 = vst [vmem:[%s215 + $0x20] sm:$0xff] %v224
            %v226 = vld [vmem:[%s214 + $0x28] sm:$0xff]
            %227 = vst [vmem:[%s215 + $0x28] sm:$0xff] %v226
            %v228 = vld [vmem:[%s214 + $0x30] sm:$0xff]
            %229 = vst [vmem:[%s215 + $0x30] sm:$0xff] %v228
            %v230 = vld [vmem:[%s214 + $0x38] sm:$0xff]
            %231 = vst [vmem:[%s215 + $0x38] sm:$0xff] %v230
          $region63: #{reverse.0} parent=57 // loop_footer
            %s213 = sadd.s32 1, %s209
          $region64: #{reverse.0} parent=57 // loop_footer_branch
            %208 = sbr.rel target = $region60
          $region65: #{reverse.0} parent=57 // loop_exit
            _
        $region58: #{reverse.0} parent=42 // pred_fallthru
          _
        // Predicated region
        $region66: #{reverse.0} parent=42 // pred_check
          _
        $region67: #{reverse.0} parent=42 // pred_check_branch
          %233 = sbr.rel target = $region69
        $region68: #{reverse.0} parent=42 // pred_region
          _
        $region69: #{reverse.0} parent=42 // pred_fallthru
          _
      $region43: #{reverse.0} parent=38 // pred_fallthru
        _
      // Predicated region
      $region44: #{reverse.0} parent=38 // pred_check
        _
      $region45: #{reverse.0} parent=38 // pred_check_branch
        %179 = sbr.rel target = $region47
      $region46: #{reverse.0} parent=38 // pred_region
        %s181 = ssub.s32 256, 1
        loop: start=0, step=1, limit=1
        $region48: #{reverse.0} parent=46 // loop_pre_header
          _
        $region49: #{reverse.0} parent=46 // loop_header
          %s183 = sphi 0, %s187
          %p184 = scmp.ge.s32.totalorder %s183, 1
          %s188 = sphi [#allocation1], [#allocation1]
          %s189 = sphi %s1, %s1
        $region50: #{reverse.0} parent=46 // loop_header_branch
          %186 = sbr.rel (%p184) target = $region54
        $region51: #{reverse.0} parent=46 // loop_body
          %v190 = vld [vmem:[%s188] sm:%s181]
          %191 = vst [vmem:[%s189] sm:%s181] %v190
          %v192 = vld [vmem:[%s188 + $0x8] sm:%s181]
          %193 = vst [vmem:[%s189 + $0x8] sm:%s181] %v192
          %v194 = vld [vmem:[%s188 + $0x10] sm:%s181]
          %195 = vst [vmem:[%s189 + $0x10] sm:%s181] %v194
          %v196 = vld [vmem:[%s188 + $0x18] sm:%s181]
          %197 = vst [vmem:[%s189 + $0x18] sm:%s181] %v196
          %v198 = vld [vmem:[%s188 + $0x20] sm:%s181]
          %199 = vst [vmem:[%s189 + $0x20] sm:%s181] %v198
          %v200 = vld [vmem:[%s188 + $0x28] sm:%s181]
          %201 = vst [vmem:[%s189 + $0x28] sm:%s181] %v200
          %v202 = vld [vmem:[%s188 + $0x30] sm:%s181]
          %203 = vst [vmem:[%s189 + $0x30] sm:%s181] %v202
          %v204 = vld [vmem:[%s188 + $0x38] sm:%s181]
          %205 = vst [vmem:[%s189 + $0x38] sm:%s181] %v204
        $region52: #{reverse.0} parent=46 // loop_footer
          %s187 = sadd.s32 1, %s183
        $region53: #{reverse.0} parent=46 // loop_footer_branch
          %182 = sbr.rel target = $region49
        $region54: #{reverse.0} parent=46 // loop_exit
          _
      $region47: #{reverse.0} parent=38 // pred_fallthru
        _
    $region39: #{reverse.0} parent=1 // pred_fallthru
      _
    %234 = vnop

// kernel: a_call__.1
$region0: #{a_call__.1}
  #allocation0 [shape = 'u32[]', space=smem, size = 0x4, offset = 0x4, fixed_abs, tag = 'smem constant byte address 0x4 - core index']
  #allocation1 [shape = 'u32[72,128]{1,0:T(1,128)}', space=vmem, size = 0x9000, scoped, tag = 'internal scratch']
  %s0 = inlined_call_operand.vmem [shape: f32[2,8,128], index: 0, kind: input, shape index: {}]
  %s1 = inlined_call_operand.vmem [shape: f32[8,8,128], index: 1, kind: input, shape index: {}]
  %s2 = inlined_call_operand.vmem [shape: f32[2,8,128], index: 2, kind: output, shape index: {}]
  %s3 = sld [smem:[#allocation0]]
  $region41: #{a_call__.1} parent=0
    _
  %s5 = ssub.s32 1, %s3
  %s6 = scalar_select 0, %s5, %s3
  loop: start=0, step=1, limit=4
  $region2: #{a_call__.1} parent=0 // loop_pre_header
    _
  $region3: #{a_call__.1} parent=0 // loop_header
    %s8 = sphi 0, %s12
    %p9 = scmp.ge.s32.totalorder %s8, 4
    %s15 = sphi 0, %s27
    %s16 = sphi 0, %s23
    %s17 = sphi 0, %s15
    %s18 = sphi 0, %s16
    %s19 = sphi 0, %s17
    %s20 = sphi 0, %s18
    %s32 = sphi 0, %s34
    %s35 = sphi 0, %s32
    %s36 = sphi 0, %s35
    %s52 = sphi 0, %s36
    %s58 = sphi 0, %s60
    %s61 = sphi 0, %s58
    %s62 = sphi 0, %s61
    %s78 = sphi 0, %s62
    %s86 = sphi 0, %s88
    %s89 = sphi 0, %s86
    %s90 = sphi 0, %s89
    %s106 = sphi 0, %s90
  $region4: #{a_call__.1} parent=0 // loop_header_branch
    %11 = sbr.rel (%p9) target = $region8
  $region5: #{a_call__.1} parent=0 // loop_body
    %s13 = ssub.s32 %s8, 1
    %s14 = ssub.s32 %s8, 2
    %s21 = sadd.s32 1, %s16
    %p22 = scmp.ge.s32.totalorder %s21, 2
    %s23 = scalar_select %p22, 0, %s21
    %s24 = sadd.s32 1, %s15
    %s25 = scalar_select %p22, %s24, %s15
    %p26 = scmp.ge.s32.totalorder %s25, 1
    %s27 = scalar_select %p26, 0, %s25
    %s28 = ssub.s32 %s16, %s23
    %s29 = ssub.s32 %s15, %s27
    %s30 = sor.u32 %s28, %s29
    %p31 = scmp.eq.s32.totalorder %s30, 0
    %s33 = sadd.s32 %s32, 1
    %s34 = scalar_select %p31, %s32, %s33
    %p37 = pneg %p31
    %p38 = scmp.eq.s32.totalorder %s8, 1
    %p39 = por %p37, %p38
    %p40 = scmp.ne.s32.totalorder %s32, %s35
    %p41 = scmp.eq.s32.totalorder %s8, 0
    %p42 = por %p40, %p41
    %p43 = scmp.ne.s32.totalorder %s32, %s35
    %p44 = scmp.eq.s32.totalorder %s13, 1
    %p45 = por %p43, %p44
    %p46 = scmp.ne.s32.totalorder %s35, %s36
    %p47 = scmp.eq.s32.totalorder %s13, 0
    %p48 = por %p46, %p47
    %p49 = scmp.ne.s32.totalorder %s35, %s36
    %p50 = scmp.eq.s32.totalorder %s14, 1
    %p51 = por %p49, %p50
    %p53 = scmp.ne.s32.totalorder %s36, %s52
    %p54 = scmp.eq.s32.totalorder %s14, 0
    %p55 = por %p53, %p54
    %s56 = ssub.s32 %s15, %s27
    %p57 = scmp.eq.s32.totalorder %s56, 0
    %s59 = sadd.s32 %s58, 1
    %s60 = scalar_select %p57, %s58, %s59
    %p63 = pneg %p57
    %p64 = scmp.eq.s32.totalorder %s8, 1
    %p65 = por %p63, %p64
    %p66 = scmp.ne.s32.totalorder %s58, %s61
    %p67 = scmp.eq.s32.totalorder %s8, 0
    %p68 = por %p66, %p67
    %p69 = scmp.ne.s32.totalorder %s58, %s61
    %p70 = scmp.eq.s32.totalorder %s13, 1
    %p71 = por %p69, %p70
    %p72 = scmp.ne.s32.totalorder %s61, %s62
    %p73 = scmp.eq.s32.totalorder %s13, 0
    %p74 = por %p72, %p73
    %p75 = scmp.ne.s32.totalorder %s61, %s62
    %p76 = scmp.eq.s32.totalorder %s14, 1
    %p77 = por %p75, %p76
    %p79 = scmp.ne.s32.totalorder %s62, %s78
    %p80 = scmp.eq.s32.totalorder %s14, 0
    %p81 = por %p79, %p80
    %s82 = ssub.s32 %s16, %s23
    %s83 = ssub.s32 %s15, %s27
    %s84 = sor.u32 %s82, %s83
    %p85 = scmp.eq.s32.totalorder %s84, 0
    %s87 = sadd.s32 %s86, 1
    %s88 = scalar_select %p85, %s86, %s87
    %p91 = pneg %p85
    %p92 = scmp.eq.s32.totalorder %s8, 1
    %p93 = por %p91, %p92
    %p94 = scmp.ne.s32.totalorder %s86, %s89
    %p95 = scmp.eq.s32.totalorder %s8, 0
    %p96 = por %p94, %p95
    %p97 = scmp.ne.s32.totalorder %s86, %s89
    %p98 = scmp.eq.s32.totalorder %s13, 1
    %p99 = por %p97, %p98
    %p100 = scmp.ne.s32.totalorder %s89, %s90
    %p101 = scmp.eq.s32.totalorder %s13, 0
    %p102 = por %p100, %p101
    %p103 = scmp.ne.s32.totalorder %s89, %s90
    %p104 = scmp.eq.s32.totalorder %s14, 1
    %p105 = por %p103, %p104
    %p107 = scmp.ne.s32.totalorder %s90, %s106
    %p108 = scmp.eq.s32.totalorder %s14, 0
    %p109 = por %p107, %p108
    %p110 = scmp.le.s32.totalorder 1, %s8
    %p111 = scmp.lt.s32.totalorder %s8, 3
    %p112 = pnand %p110, %p111
    %p113 = pneg %p112
    // Predicated region
    $region9: #{a_call__.1} parent=5 // pred_check
      _
    $region10: #{a_call__.1} parent=5 // pred_check_branch
      %115 = sbr.rel (%p112) target = $region12
    $region11: #{a_call__.1} parent=5 // pred_region
      %s116 = ssub.s32 %s8, 1
      // Predicated region
      $region13: #{a_call__.1} parent=11 // pred_check
        %p117 = pneg %p74
      $region14: #{a_call__.1} parent=11 // pred_check_branch
        %119 = sbr.rel (%p117) target = $region16
      $region15: #{a_call__.1} parent=11 // pred_region
        %p120 = scmp.lt.s32.totalorder %s17, 0
        %s121 = scalar_select %p120, %s17, 0
        %s122 = smul.addr %s121, 8
        %s123 = scalar_lea.vmem %s1, %s122
      $region16: #{a_call__.1} parent=11 // pred_fallthru
        _
    $region12: #{a_call__.1} parent=5 // pred_fallthru
      _
    %p124 = scmp.lt.s32.totalorder %s8, 2
    // Predicated region
    $region17: #{a_call__.1} parent=5 // pred_check
      %p125 = pneg %p124
    $region18: #{a_call__.1} parent=5 // pred_check_branch
      %127 = sbr.rel (%p125) target = $region20
    $region19: #{a_call__.1} parent=5 // pred_region
      // Predicated region
      $region21: #{a_call__.1} parent=19 // pred_check
        %p128 = pneg %p42
      $region22: #{a_call__.1} parent=19 // pred_check_branch
        %130 = sbr.rel (%p128) target = $region24
      $region23: #{a_call__.1} parent=19 // pred_region
        %p131 = scmp.lt.s32.totalorder %s16, 1
        %s132 = scalar_select %p131, %s16, 1
        %p133 = scmp.lt.s32.totalorder %s15, 0
        %s134 = scalar_select %p133, %s15, 0
        %s135 = sadd.s32 %s134, %s132
        %s136 = smul.addr %s135, 8
        %s137 = scalar_lea.vmem %s0, %s136
      $region24: #{a_call__.1} parent=19 // pred_fallthru
        _
    $region20: #{a_call__.1} parent=5 // pred_fallthru
      _
    %p138 = scmp.le.s32.totalorder 1, %s8
    %p139 = scmp.lt.s32.totalorder %s8, 3
    %p140 = pnand %p138, %p139
    %p141 = pneg %p140
    // Predicated region
    $region25: #{a_call__.1} parent=5 // pred_check
      _
    $region26: #{a_call__.1} parent=5 // pred_check_branch
      %143 = sbr.rel (%p140) target = $region28
    $region27: #{a_call__.1} parent=5 // pred_region
      %s144 = ssub.s32 %s8, 1
      %p145 = scmp.lt.s32.totalorder %s18, 1
      %s146 = scalar_select %p145, %s18, 1
      %p147 = scmp.lt.s32.totalorder %s17, 0
      %s148 = scalar_select %p147, %s17, 0
      %s149 = sadd.s32 %s148, %s146
      %s150 = smul.addr %s149, 8
      %s151 = scalar_lea.vmem %s0, %s150
      %p152 = pneg %p48
      %p153 = pneg %p45
      %p154 = scmp.lt.s32.totalorder %s17, 0
      %s155 = scalar_select %p154, %s17, 0
      %s156 = smul.addr %s155, 8
      %s157 = scalar_lea.vmem %s1, %s156
      %p158 = pneg %p74
      %p159 = pneg %p71
      %p160 = pneg %p102
      %p161 = pneg %p99
      %p162 = scmp.lt.s32.totalorder %s18, 1
      %s163 = scalar_select %p162, %s18, 1
      %p164 = scmp.lt.s32.totalorder %s17, 0
      %s165 = scalar_select %p164, %s17, 0
      %s166 = sadd.s32 %s165, %s163
      %s167 = smul.addr %s166, 8
      %s168 = scalar_lea.vmem %s2, %s167
      %p169 = scmp.lt.s32.totalorder %s18, 1
      %s170 = scalar_select %p169, %s18, 1
      %p171 = scmp.lt.s32.totalorder %s17, 0
      %s172 = scalar_select %p171, %s17, 0
      %s173 = sadd.s32 %s172, %s170
      %s174 = smul.addr %s173, 8
      %s175 = scalar_lea.vmem %s0, %s174
      %p176 = scmp.lt.s32.totalorder %s17, 0
      %s177 = scalar_select %p176, %s17, 0
      %s178 = smul.addr %s177, 8
      %s179 = scalar_lea.vmem %s1, %s178
      %p180 = scmp.lt.s32.totalorder %s18, 1
      %s181 = scalar_select %p180, %s18, 1
      %p182 = scmp.lt.s32.totalorder %s17, 0
      %s183 = scalar_select %p182, %s17, 0
      %s184 = sadd.s32 %s183, %s181
      %s185 = smul.addr %s184, 8
      %s186 = scalar_lea.vmem %s2, %s185
      %v187 = vld [vmem:[%s175] sm:$0x1]
      %v188 = vld [vmem:[%s179] sm:$0xff]
      %v189 = vperm.slane %v187, 0
      %v190 = vmul.f32 %v189, %v188
      %v191 = vadd.f32 %v190, 0.0
      %v192 = vld [vmem:[%s175 + $0x1] sm:$0x1]
      %s193 = scalar_lea.vmem %s179, 8
      %v194 = vld [vmem:[%s193] sm:$0xff]
      %v195 = vperm.slane %v192, 0
      %v196 = vmul.f32 %v195, %v194
      %v197 = vadd.f32 %v191, %v196
      %v198 = vld [vmem:[%s175 + $0x2] sm:$0x1]
      %s199 = scalar_lea.vmem %s179, 16
      %v200 = vld [vmem:[%s199] sm:$0xff]
      %v201 = vperm.slane %v198, 0
      %v202 = vmul.f32 %v201, %v200
      %v203 = vadd.f32 %v197, %v202
      %v204 = vld [vmem:[%s175 + $0x3] sm:$0x1]
      %s205 = scalar_lea.vmem %s179, 24
      %v206 = vld [vmem:[%s205] sm:$0xff]
      %v207 = vperm.slane %v204, 0
      %v208 = vmul.f32 %v207, %v206
      %v209 = vadd.f32 %v203, %v208
      %v210 = vld [vmem:[%s175 + $0x4] sm:$0x1]
      %s211 = scalar_lea.vmem %s179, 32
      %v212 = vld [vmem:[%s211] sm:$0xff]
      %v213 = vperm.slane %v210, 0
      %v214 = vmul.f32 %v213, %v212
      %v215 = vadd.f32 %v209, %v214
      %v216 = vld [vmem:[%s175 + $0x5] sm:$0x1]
      %s217 = scalar_lea.vmem %s179, 40
      %v218 = vld [vmem:[%s217] sm:$0xff]
      %v219 = vperm.slane %v216, 0
      %v220 = vmul.f32 %v219, %v218
      %v221 = vadd.f32 %v215, %v220
      %v222 = vld [vmem:[%s175 + $0x6] sm:$0x1]
      %s223 = scalar_lea.vmem %s179, 48
      %v224 = vld [vmem:[%s223] sm:$0xff]
      %v225 = vperm.slane %v222, 0
      %v226 = vmul.f32 %v225, %v224
      %v227 = vadd.f32 %v221, %v226
      %v228 = vld [vmem:[%s175 + $0x7] sm:$0x1]
      %s229 = scalar_lea.vmem %s179, 56
      %v230 = vld [vmem:[%s229] sm:$0xff]
      %v231 = vperm.slane %v228, 0
      %v232 = vmul.f32 %v231, %v230
      %v233 = vadd.f32 %v227, %v232
      %234 = vst [vmem:[%s186] sm:$0xff] %v233
      %p235 = scmp.lt.s32.totalorder %s18, 1
      %s236 = scalar_select %p235, %s18, 1
      %p237 = scmp.lt.s32.totalorder %s17, 0
      %s238 = scalar_select %p237, %s17, 0
      %s239 = sadd.s32 %s238, %s236
      %s240 = smul.addr %s239, 8
      %s241 = scalar_lea.vmem %s2, %s240
      // Predicated region
      $region29: #{a_call__.1} parent=27 // pred_check
        %p242 = pneg %p99
      $region30: #{a_call__.1} parent=27 // pred_check_branch
        %244 = sbr.rel (%p242) target = $region32
      $region31: #{a_call__.1} parent=27 // pred_region
        _
      $region32: #{a_call__.1} parent=27 // pred_fallthru
        _
    $region28: #{a_call__.1} parent=5 // pred_fallthru
      _
    %p245 = scmp.le.s32.totalorder 2, %s8
    // Predicated region
    $region33: #{a_call__.1} parent=5 // pred_check
      %p246 = pneg %p245
    $region34: #{a_call__.1} parent=5 // pred_check_branch
      %248 = sbr.rel (%p246) target = $region36
    $region35: #{a_call__.1} parent=5 // pred_region
      %s249 = ssub.s32 %s8, 2
      // Predicated region
      $region37: #{a_call__.1} parent=35 // pred_check
        %p250 = pneg %p105
      $region38: #{a_call__.1} parent=35 // pred_check_branch
        %252 = sbr.rel (%p250) target = $region40
      $region39: #{a_call__.1} parent=35 // pred_region
        %p253 = scmp.lt.s32.totalorder %s20, 1
        %s254 = scalar_select %p253, %s20, 1
        %p255 = scmp.lt.s32.totalorder %s19, 0
        %s256 = scalar_select %p255, %s19, 0
        %s257 = sadd.s32 %s256, %s254
        %s258 = smul.addr %s257, 8
        %s259 = scalar_lea.vmem %s2, %s258
      $region40: #{a_call__.1} parent=35 // pred_fallthru
        _
    $region36: #{a_call__.1} parent=5 // pred_fallthru
      _
  $region6: #{a_call__.1} parent=0 // loop_footer
    %s12 = sadd.s32 1, %s8
  $region7: #{a_call__.1} parent=0 // loop_footer_branch
    %7 = sbr.rel target = $region3
  $region8: #{a_call__.1} parent=0 // loop_exit
    _

</llo_original>
